<compile_context>
chip_gen: v5e
topology: v5e:2x2
jax: 0.10.0
libtpu: 0.0.40
codegen_flags: <defaults>
</compile_context>

<pallas_src>
import functools

import jax
import jax.numpy as jnp
from jax.experimental import pallas as pl
from jax.experimental.pallas import tpu as pltpu


def mlp_kernel(x_ref, w1_ref, b1_ref, w2_ref, b2_ref, o_ref):
    """Fused Linear(D_in, H) -> ReLU -> Linear(H, A), single shot in VMEM."""
    # Cast x to bf16 in-kernel (VPU, ~free) for the native MXU path.
    x_bf = x_ref[...].astype(w1_ref.dtype)

    # First matmul on the MXU, f32 accumulation; bias add + ReLU on the VPU in f32.
    h = jnp.dot(x_bf, w1_ref[...], preferred_element_type=jnp.float32)
    h = jnp.maximum(h + b1_ref[...], 0.0)

    # Second matmul: bf16 activations x bf16 weights, f32 accumulation.
    acc = jnp.dot(h.astype(w2_ref.dtype), w2_ref[...],
                  preferred_element_type=jnp.float32)
    o_ref[...] = (acc + b2_ref[...]).astype(o_ref.dtype)


def prepare_params(w1, b1, w2, b2):
    """One-time parameter preprocessing (hoisted out of the per-call path)."""
    D_in, H = w1.shape
    H2, A = w2.shape
    assert H == H2 and b1.shape == (H,) and b2.shape == (A,)
    w1_bf = w1.astype(jnp.bfloat16)
    w2_bf = w2.astype(jnp.bfloat16)
    b1_2d = b1.reshape(1, H).astype(jnp.float32)
    b2_2d = b2.reshape(1, A).astype(jnp.float32)
    return w1_bf, b1_2d, w2_bf, b2_2d


@functools.partial(jax.jit, static_argnames=())
def mlp_forward(x, w1_bf, b1_2d, w2_bf, b2_2d):
    """Jitted forward: x is f32 (B, D_in); params come from prepare_params()."""
    B, D_in = x.shape
    H, A = w2_bf.shape
    assert w1_bf.shape == (D_in, H)

    vmem = pl.BlockSpec(memory_space=pltpu.MemorySpace.VMEM)
    out = pl.pallas_call(
        mlp_kernel,
        out_shape=jax.ShapeDtypeStruct((B, A), jnp.float32),
        in_specs=[vmem, vmem, vmem, vmem, vmem],
        out_specs=vmem,
    )(x, w1_bf, b1_2d, w2_bf, b2_2d)
    return out.astype(x.dtype)


if __name__ == "__main__":
    # Forward-implied shapes: input_shape=32 features, nb_actions=16, batch=8.
    B, D_IN, H, A = 8, 32, 2048, 16

    key = jax.random.PRNGKey(0)
    kx, k1, k2, k3, k4 = jax.random.split(key, 5)

    x = jax.random.normal(kx, (B, D_IN), dtype=jnp.float32)
    # Deterministic parameter init (scaled like PyTorch's uniform fan-in bound).
    w1 = jax.random.uniform(k1, (D_IN, H), jnp.float32, -1.0, 1.0) / jnp.sqrt(D_IN)
    b1 = jax.random.uniform(k2, (H,), jnp.float32, -1.0, 1.0) / jnp.sqrt(D_IN)
    w2 = jax.random.uniform(k3, (H, A), jnp.float32, -1.0, 1.0) / jnp.sqrt(H)
    b2 = jax.random.uniform(k4, (A,), jnp.float32, -1.0, 1.0) / jnp.sqrt(H)

    # One-time weight preparation (outside the hot path).
    params = prepare_params(w1, b1, w2, b2)

    out = mlp_forward(x, *params)
    out = jax.block_until_ready(out)

    # Pure-JAX f32 reference (tolerance loosened for bf16 weight/activation cast).
    ref = jnp.maximum(x @ w1 + b1, 0.0) @ w2 + b2
    assert out.shape == (B, A)
    assert jnp.allclose(out, ref, atol=2e-2, rtol=2e-2), "mismatch vs reference"

    print("KERNEL_OK")
</pallas_src>

<mosaic_0001>
module attributes {stable_mosaic.version = 11 : i64} {
  func.func @mlp_kernel(%arg0: memref<8x32xf32, #tpu.memory_space<vmem>>, %arg1: memref<32x2048xbf16, #tpu.memory_space<vmem>>, %arg2: memref<1x2048xf32, #tpu.memory_space<vmem>>, %arg3: memref<2048x16xbf16, #tpu.memory_space<vmem>>, %arg4: memref<1x16xf32, #tpu.memory_space<vmem>>, %arg5: memref<8x16xf32, #tpu.memory_space<vmem>>) attributes {dimension_semantics = [], scalar_prefetch = 0 : i64, scratch_operands = 0 : i64, tpu.core_type = #tpu.core_type<tc>} {
    %c0 = arith.constant 0 : index
    %c0_0 = arith.constant 0 : index
    %0 = vector.load %arg0[%c0, %c0_0] : memref<8x32xf32, #tpu.memory_space<vmem>>, vector<8x32xf32>
    %1 = arith.truncf %0 : vector<8x32xf32> to vector<8x32xbf16>
    %c0_1 = arith.constant 0 : index
    %c0_2 = arith.constant 0 : index
    %2 = vector.load %arg1[%c0_1, %c0_2] : memref<32x2048xbf16, #tpu.memory_space<vmem>>, vector<32x2048xbf16>
    %cst = arith.constant dense<0.000000e+00> : vector<8x2048xf32>
    %3 = tpu.matmul %1, %2, %cst {dimension_numbers = #tpu.dot_dimension_numbers<[1], [0], [0], [1], [0, 0, 1, 1], [], []>} : vector<8x32xbf16>, vector<32x2048xbf16>, vector<8x2048xf32> -> vector<8x2048xf32>
    %c0_3 = arith.constant 0 : index
    %c0_4 = arith.constant 0 : index
    %4 = vector.load %arg2[%c0_3, %c0_4] : memref<1x2048xf32, #tpu.memory_space<vmem>>, vector<1x2048xf32>
    %5 = vector.broadcast %4 : vector<1x2048xf32> to vector<8x2048xf32>
    %6 = arith.addf %3, %5 : vector<8x2048xf32>
    %cst_5 = arith.constant 0.000000e+00 : f32
    %7 = vector.broadcast %cst_5 : f32 to vector<8x2048xf32>
    %8 = arith.maximumf %6, %7 : vector<8x2048xf32>
    %9 = arith.truncf %8 : vector<8x2048xf32> to vector<8x2048xbf16>
    %c0_6 = arith.constant 0 : index
    %c0_7 = arith.constant 0 : index
    %10 = vector.load %arg3[%c0_6, %c0_7] : memref<2048x16xbf16, #tpu.memory_space<vmem>>, vector<2048x16xbf16>
    %cst_8 = arith.constant dense<0.000000e+00> : vector<8x16xf32>
    %11 = tpu.matmul %9, %10, %cst_8 {dimension_numbers = #tpu.dot_dimension_numbers<[1], [0], [0], [1], [0, 0, 1, 1], [], []>} : vector<8x2048xbf16>, vector<2048x16xbf16>, vector<8x16xf32> -> vector<8x16xf32>
    %c0_9 = arith.constant 0 : index
    %c0_10 = arith.constant 0 : index
    %12 = vector.load %arg4[%c0_9, %c0_10] : memref<1x16xf32, #tpu.memory_space<vmem>>, vector<1x16xf32>
    %13 = vector.broadcast %12 : vector<1x16xf32> to vector<8x16xf32>
    %14 = arith.addf %11, %13 : vector<8x16xf32>
    %c0_11 = arith.constant 0 : index
    %c0_12 = arith.constant 0 : index
    %15 = vector.load %arg5[%c0_11, %c0_12] : memref<8x16xf32, #tpu.memory_space<vmem>>, vector<8x16xf32>
    tpu.vector_store %arg5[%c0_11, %c0_12], %14 {strides = array<i32>} : memref<8x16xf32, #tpu.memory_space<vmem>>, vector<8x16xf32>,
    return
  }
}

</mosaic_0001>

<llo_original>
// kernel: mlp_forward.1
$region0: #{mlp_forward.1}
  #allocation0 [shape = 'u32[]', space=smem, size = 0x4, offset = 0x4, fixed_abs, tag = 'smem constant byte address 0x4 - core index']
  #allocation1 [shape = 'u32[72,128]{1,0:T(1,128)}', space=vmem, size = 0x9000, scoped, tag = 'internal scratch']
  %s0 = inlined_call_operand.vmem [shape: f32[8,32], index: 0, kind: input, shape index: {}]
  %s1 = inlined_call_operand.vmem [shape: bf16[32,2048], index: 1, kind: input, shape index: {}]
  %s2 = inlined_call_operand.vmem [shape: f32[1,2048], index: 2, kind: input, shape index: {}]
  %s3 = inlined_call_operand.vmem [shape: bf16[2048,16], index: 3, kind: input, shape index: {}]
  %s4 = inlined_call_operand.vmem [shape: f32[1,16], index: 4, kind: input, shape index: {}]
  %s5 = inlined_call_operand.hbm [shape: f32[8,16], index: 5, kind: output, shape index: {}]
  %s6 = sld [smem:[#allocation0]]
  $region30: #{mlp_forward.1} parent=0
    _
  %s8 = ssub.s32 1, %s6
  %s9 = scalar_select 0, %s8, %s6
  $region1: #{mlp_forward.1} parent=0
    #allocation2 [shape = 'u8[4096]{0}', space=vmem, size = 0x1000, scoped, tag = 'output window, operand 0, single buffered']
    #allocation3 [shape = 's32[1]{0}', space=sflag, size = 0x4, scoped, tag = 'scoped memory for mlp_forward.1']
    %10 = vsyncpa [#allocation3], 0
    // Predicated region
    $region2: #{mlp_forward.1} parent=1 // pred_check
      _
    $region3: #{mlp_forward.1} parent=1 // pred_check_branch
      %12 = sbr.rel (0) target = $region5
    $region4: #{mlp_forward.1} parent=1 // pred_region
      _
    $region5: #{mlp_forward.1} parent=1 // pred_fallthru
      _
    // Predicated region
    $region6: #{mlp_forward.1} parent=1 // pred_check
      _
    $region7: #{mlp_forward.1} parent=1 // pred_check_branch
      %14 = sbr.rel (0) target = $region9
    $region8: #{mlp_forward.1} parent=1 // pred_region
      _
    $region9: #{mlp_forward.1} parent=1 // pred_fallthru
      _
    // Predicated region
    $region10: #{mlp_forward.1} parent=1 // pred_check
      _
    $region11: #{mlp_forward.1} parent=1 // pred_check_branch
      %16 = sbr.rel (0) target = $region13
    $region12: #{mlp_forward.1} parent=1 // pred_region
      _
    $region13: #{mlp_forward.1} parent=1 // pred_fallthru
      _
    // Predicated region
    $region14: #{mlp_forward.1} parent=1 // pred_check
      _
    $region15: #{mlp_forward.1} parent=1 // pred_check_branch
      %18 = sbr.rel (0) target = $region17
    $region16: #{mlp_forward.1} parent=1 // pred_region
      _
    $region17: #{mlp_forward.1} parent=1 // pred_fallthru
      _
    // Predicated region
    $region18: #{mlp_forward.1} parent=1 // pred_check
      _
    $region19: #{mlp_forward.1} parent=1 // pred_check_branch
      %20 = sbr.rel (0) target = $region21
    $region20: #{mlp_forward.1} parent=1 // pred_region
      _
    $region21: #{mlp_forward.1} parent=1 // pred_fallthru
      _
    %v22 = vld [vmem:[%s0] sm:$0xff]
    %v23 = vpack.c.bf16 %v22, %v22
    %v24 = vld [vmem:[%s1] sm:$0xff]
    %v25 = vld [vmem:[%s1 + $0x8] sm:$0xff]
    %v26 = vld [vmem:[%s1 + $0x10] sm:$0xff]
    %v27 = vld [vmem:[%s1 + $0x18] sm:$0xff]
    %v28 = vld [vmem:[%s1 + $0x20] sm:$0xff]
    %v29 = vld [vmem:[%s1 + $0x28] sm:$0xff]
    %v30 = vld [vmem:[%s1 + $0x30] sm:$0xff]
    %v31 = vld [vmem:[%s1 + $0x38] sm:$0xff]
    %v32 = vld [vmem:[%s1 + $0x40] sm:$0xff]
    %v33 = vld [vmem:[%s1 + $0x48] sm:$0xff]
    %v34 = vld [vmem:[%s1 + $0x50] sm:$0xff]
    %v35 = vld [vmem:[%s1 + $0x58] sm:$0xff]
    %v36 = vld [vmem:[%s1 + $0x60] sm:$0xff]
    %v37 = vld [vmem:[%s1 + $0x68] sm:$0xff]
    %v38 = vld [vmem:[%s1 + $0x70] sm:$0xff]
    %v39 = vld [vmem:[%s1 + $0x78] sm:$0xff]
    %v40 = vld [vmem:[%s1 + $0x80] sm:$0xff]
    %v41 = vld [vmem:[%s1 + $0x88] sm:$0xff]
    %v42 = vld [vmem:[%s1 + $0x90] sm:$0xff]
    %v43 = vld [vmem:[%s1 + $0x98] sm:$0xff]
    %v44 = vld [vmem:[%s1 + $0xa0] sm:$0xff]
    %v45 = vld [vmem:[%s1 + $0xa8] sm:$0xff]
    %v46 = vld [vmem:[%s1 + $0xb0] sm:$0xff]
    %v47 = vld [vmem:[%s1 + $0xb8] sm:$0xff]
    %v48 = vld [vmem:[%s1 + $0xc0] sm:$0xff]
    %v49 = vld [vmem:[%s1 + $0xc8] sm:$0xff]
    %v50 = vld [vmem:[%s1 + $0xd0] sm:$0xff]
    %v51 = vld [vmem:[%s1 + $0xd8] sm:$0xff]
    %v52 = vld [vmem:[%s1 + $0xe0] sm:$0xff]
    %v53 = vld [vmem:[%s1 + $0xe8] sm:$0xff]
    %v54 = vld [vmem:[%s1 + $0xf0] sm:$0xff]
    %v55 = vld [vmem:[%s1 + $0xf8] sm:$0xff]
    %v56 = vld [vmem:[%s2] sm:$0xff]
    %v57 = vld [vmem:[%s2 + $0x8] sm:$0xff]
    %v60 = vperm.slane %v56, 0
    %v61 = vperm.slane %v56, 1
    %v62 = vperm.slane %v56, 2
    %v63 = vperm.slane %v56, 3
    %v64 = vperm.slane %v56, 4
    %v65 = vperm.slane %v56, 5
    %v66 = vperm.slane %v56, 6
    %v67 = vperm.slane %v56, 7
    %v68 = vperm.slane %v57, 0
    %v69 = vperm.slane %v57, 1
    %v70 = vperm.slane %v57, 2
    %v71 = vperm.slane %v57, 3
    %v72 = vperm.slane %v57, 4
    %v73 = vperm.slane %v57, 5
    %v74 = vperm.slane %v57, 6
    %v75 = vperm.slane %v57, 7
    %v124 = vunpack.c.l.b16 %v24
    %v125 = vunpack.c.h.b16 %v24
    %v126 = vunpack.c.l.b16 %v25
    %v127 = vunpack.c.h.b16 %v25
    %v128 = vunpack.c.l.b16 %v26
    %v129 = vunpack.c.h.b16 %v26
    %v130 = vunpack.c.l.b16 %v27
    %v131 = vunpack.c.h.b16 %v27
    %v132 = vunpack.c.l.b16 %v28
    %v133 = vunpack.c.h.b16 %v28
    %v134 = vunpack.c.l.b16 %v29
    %v135 = vunpack.c.h.b16 %v29
    %v136 = vunpack.c.l.b16 %v30
    %v137 = vunpack.c.h.b16 %v30
    %v138 = vunpack.c.l.b16 %v31
    %v139 = vunpack.c.h.b16 %v31
    %v140 = vunpack.c.l.b16 %v32
    %v141 = vunpack.c.h.b16 %v32
    %v142 = vunpack.c.l.b16 %v33
    %v143 = vunpack.c.h.b16 %v33
    %v144 = vunpack.c.l.b16 %v34
    %v145 = vunpack.c.h.b16 %v34
    %v146 = vunpack.c.l.b16 %v35
    %v147 = vunpack.c.h.b16 %v35
    %v148 = vunpack.c.l.b16 %v36
    %v149 = vunpack.c.h.b16 %v36
    %v150 = vunpack.c.l.b16 %v37
    %v151 = vunpack.c.h.b16 %v37
    %v152 = vunpack.c.l.b16 %v38
    %v153 = vunpack.c.h.b16 %v38
    %v154 = vunpack.c.l.b16 %v39
    %v155 = vunpack.c.h.b16 %v39
    %v156 = vunpack.c.l.b16 %v40
    %v157 = vunpack.c.h.b16 %v40
    %v158 = vunpack.c.l.b16 %v41
    %v159 = vunpack.c.h.b16 %v41
    %v160 = vunpack.c.l.b16 %v42
    %v161 = vunpack.c.h.b16 %v42
    %v162 = vunpack.c.l.b16 %v43
    %v163 = vunpack.c.h.b16 %v43
    %v164 = vunpack.c.l.b16 %v44
    %v165 = vunpack.c.h.b16 %v44
    %v166 = vunpack.c.l.b16 %v45
    %v167 = vunpack.c.h.b16 %v45
    %v168 = vunpack.c.l.b16 %v46
    %v169 = vunpack.c.h.b16 %v46
    %v170 = vunpack.c.l.b16 %v47
    %v171 = vunpack.c.h.b16 %v47
    %v172 = vunpack.c.l.b16 %v48
    %v173 = vunpack.c.h.b16 %v48
    %v174 = vunpack.c.l.b16 %v49
    %v175 = vunpack.c.h.b16 %v49
    %v176 = vunpack.c.l.b16 %v50
    %v177 = vunpack.c.h.b16 %v50
    %v178 = vunpack.c.l.b16 %v51
    %v179 = vunpack.c.h.b16 %v51
    %v180 = vunpack.c.l.b16 %v52
    %v181 = vunpack.c.h.b16 %v52
    %v182 = vunpack.c.l.b16 %v53
    %v183 = vunpack.c.h.b16 %v53
    %v184 = vunpack.c.l.b16 %v54
    %v185 = vunpack.c.h.b16 %v54
    %v186 = vunpack.c.l.b16 %v55
    %v187 = vunpack.c.h.b16 %v55
    %v188 = vpack.c.b16 %v140, %v124
    %v189 = vpack.c.b16 %v141, %v125
    %v190 = vpack.c.b16 %v142, %v126
    %v191 = vpack.c.b16 %v143, %v127
    %v192 = vpack.c.b16 %v144, %v128
    %v193 = vpack.c.b16 %v145, %v129
    %v194 = vpack.c.b16 %v146, %v130
    %v195 = vpack.c.b16 %v147, %v131
    %v196 = vpack.c.b16 %v148, %v132
    %v197 = vpack.c.b16 %v149, %v133
    %v198 = vpack.c.b16 %v150, %v134
    %v199 = vpack.c.b16 %v151, %v135
    %v200 = vpack.c.b16 %v152, %v136
    %v201 = vpack.c.b16 %v153, %v137
    %v202 = vpack.c.b16 %v154, %v138
    %v203 = vpack.c.b16 %v155, %v139
    %v204 = vpack.c.b16 %v172, %v156
    %v205 = vpack.c.b16 %v173, %v157
    %v206 = vpack.c.b16 %v174, %v158
    %v207 = vpack.c.b16 %v175, %v159
    %v208 = vpack.c.b16 %v176, %v160
    %v209 = vpack.c.b16 %v177, %v161
    %v210 = vpack.c.b16 %v178, %v162
    %v211 = vpack.c.b16 %v179, %v163
    %v212 = vpack.c.b16 %v180, %v164
    %v213 = vpack.c.b16 %v181, %v165
    %v214 = vpack.c.b16 %v182, %v166
    %v215 = vpack.c.b16 %v183, %v167
    %v216 = vpack.c.b16 %v184, %v168
    %v217 = vpack.c.b16 %v185, %v169
    %v218 = vpack.c.b16 %v186, %v170
    %v219 = vpack.c.b16 %v187, %v171
    %vm252 = vcmask 261120
    %v254 = vsel %vm252, %v23, 0
    %256 = vmatpush.bf16.msra.mxu0 0
    %257 = vmatpush.bf16.msra.mxu0 0
    %258 = vmatpush.bf16.msra.mxu0 0
    %259 = vmatpush.bf16.msra.mxu0 0
    %260 = vmatpush.bf16.msra.mxu0 0
    %261 = vmatpush.bf16.msra.mxu0 0
    %262 = vmatpush.bf16.msra.mxu0 %v204
    %263 = vmatpush.bf16.msra.mxu0 %v188
    %264 = vmatmul.bf16.gmra.mxu0 %v254
    %v265 = vpop.f32.mrf.mxu0
    %v266 = vadd.f32 %v60, %v265
    %v267 = vpop.f32.mrf.mxu0
    %268 = vdwg.mxu0
    %269 = vmatpush.bf16.msra.mxu0 0
    %270 = vmatpush.bf16.msra.mxu0 0
    %271 = vmatpush.bf16.msra.mxu0 0
    %272 = vmatpush.bf16.msra.mxu0 0
    %273 = vmatpush.bf16.msra.mxu0 0
    %274 = vmatpush.bf16.msra.mxu0 0
    %275 = vmatpush.bf16.msra.mxu0 %v205
    %276 = vmatpush.bf16.msra.mxu0 %v189
    %277 = vmatmul.bf16.gmra.mxu0 %v254
    %v278 = vpop.f32.mrf.mxu0
    %v279 = vadd.f32 %v61, %v278
    %v280 = vpop.f32.mrf.mxu0
    %281 = vdwg.mxu0
    %282 = vmatpush.bf16.msra.mxu0 0
    %283 = vmatpush.bf16.msra.mxu0 0
    %284 = vmatpush.bf16.msra.mxu0 0
    %285 = vmatpush.bf16.msra.mxu0 0
    %286 = vmatpush.bf16.msra.mxu0 0
    %287 = vmatpush.bf16.msra.mxu0 0
    %288 = vmatpush.bf16.msra.mxu0 %v206
    %289 = vmatpush.bf16.msra.mxu0 %v190
    %290 = vmatmul.bf16.gmra.mxu0 %v254
    %v291 = vpop.f32.mrf.mxu0
    %v292 = vadd.f32 %v62, %v291
    %v293 = vpop.f32.mrf.mxu0
    %294 = vdwg.mxu0
    %295 = vmatpush.bf16.msra.mxu0 0
    %296 = vmatpush.bf16.msra.mxu0 0
    %297 = vmatpush.bf16.msra.mxu0 0
    %298 = vmatpush.bf16.msra.mxu0 0
    %299 = vmatpush.bf16.msra.mxu0 0
    %300 = vmatpush.bf16.msra.mxu0 0
    %301 = vmatpush.bf16.msra.mxu0 %v207
    %302 = vmatpush.bf16.msra.mxu0 %v191
    %303 = vmatmul.bf16.gmra.mxu0 %v254
    %v304 = vpop.f32.mrf.mxu0
    %v305 = vadd.f32 %v63, %v304
    %v306 = vpop.f32.mrf.mxu0
    %307 = vdwg.mxu0
    %308 = vmatpush.bf16.msra.mxu0 0
    %309 = vmatpush.bf16.msra.mxu0 0
    %310 = vmatpush.bf16.msra.mxu0 0
    %311 = vmatpush.bf16.msra.mxu0 0
    %312 = vmatpush.bf16.msra.mxu0 0
    %313 = vmatpush.bf16.msra.mxu0 0
    %314 = vmatpush.bf16.msra.mxu0 %v208
    %315 = vmatpush.bf16.msra.mxu0 %v192
    %316 = vmatmul.bf16.gmra.mxu0 %v254
    %v317 = vpop.f32.mrf.mxu0
    %v318 = vadd.f32 %v64, %v317
    %v319 = vpop.f32.mrf.mxu0
    %320 = vdwg.mxu0
    %321 = vmatpush.bf16.msra.mxu0 0
    %322 = vmatpush.bf16.msra.mxu0 0
    %323 = vmatpush.bf16.msra.mxu0 0
    %324 = vmatpush.bf16.msra.mxu0 0
    %325 = vmatpush.bf16.msra.mxu0 0
    %326 = vmatpush.bf16.msra.mxu0 0
    %327 = vmatpush.bf16.msra.mxu0 %v209
    %328 = vmatpush.bf16.msra.mxu0 %v193
    %329 = vmatmul.bf16.gmra.mxu0 %v254
    %v330 = vpop.f32.mrf.mxu0
    %v331 = vadd.f32 %v65, %v330
    %v332 = vpop.f32.mrf.mxu0
    %333 = vdwg.mxu0
    %334 = vmatpush.bf16.msra.mxu0 0
    %335 = vmatpush.bf16.msra.mxu0 0
    %336 = vmatpush.bf16.msra.mxu0 0
    %337 = vmatpush.bf16.msra.mxu0 0
    %338 = vmatpush.bf16.msra.mxu0 0
    %339 = vmatpush.bf16.msra.mxu0 0
    %340 = vmatpush.bf16.msra.mxu0 %v210
    %341 = vmatpush.bf16.msra.mxu0 %v194
    %342 = vmatmul.bf16.gmra.mxu0 %v254
    %v343 = vpop.f32.mrf.mxu0
    %v344 = vadd.f32 %v66, %v343
    %v345 = vpop.f32.mrf.mxu0
    %346 = vdwg.mxu0
    %347 = vmatpush.bf16.msra.mxu0 0
    %348 = vmatpush.bf16.msra.mxu0 0
    %349 = vmatpush.bf16.msra.mxu0 0
    %350 = vmatpush.bf16.msra.mxu0 0
    %351 = vmatpush.bf16.msra.mxu0 0
    %352 = vmatpush.bf16.msra.mxu0 0
    %353 = vmatpush.bf16.msra.mxu0 %v211
    %354 = vmatpush.bf16.msra.mxu0 %v195
    %355 = vmatmul.bf16.gmra.mxu0 %v254
    %v356 = vpop.f32.mrf.mxu0
    %v357 = vadd.f32 %v67, %v356
    %v358 = vpop.f32.mrf.mxu0
    %359 = vdwg.mxu0
    %360 = vmatpush.bf16.msra.mxu0 0
    %361 = vmatpush.bf16.msra.mxu0 0
    %362 = vmatpush.bf16.msra.mxu0 0
    %363 = vmatpush.bf16.msra.mxu0 0
    %364 = vmatpush.bf16.msra.mxu0 0
    %365 = vmatpush.bf16.msra.mxu0 0
    %366 = vmatpush.bf16.msra.mxu0 %v212
    %367 = vmatpush.bf16.msra.mxu0 %v196
    %368 = vmatmul.bf16.gmra.mxu0 %v254
    %v369 = vpop.f32.mrf.mxu0
    %v370 = vadd.f32 %v68, %v369
    %v371 = vpop.f32.mrf.mxu0
    %372 = vdwg.mxu0
    %373 = vmatpush.bf16.msra.mxu0 0
    %374 = vmatpush.bf16.msra.mxu0 0
    %375 = vmatpush.bf16.msra.mxu0 0
    %376 = vmatpush.bf16.msra.mxu0 0
    %377 = vmatpush.bf16.msra.mxu0 0
    %378 = vmatpush.bf16.msra.mxu0 0
    %379 = vmatpush.bf16.msra.mxu0 %v213
    %380 = vmatpush.bf16.msra.mxu0 %v197
    %381 = vmatmul.bf16.gmra.mxu0 %v254
    %v382 = vpop.f32.mrf.mxu0
    %v383 = vadd.f32 %v69, %v382
    %v384 = vpop.f32.mrf.mxu0
    %385 = vdwg.mxu0
    %386 = vmatpush.bf16.msra.mxu0 0
    %387 = vmatpush.bf16.msra.mxu0 0
    %388 = vmatpush.bf16.msra.mxu0 0
    %389 = vmatpush.bf16.msra.mxu0 0
    %390 = vmatpush.bf16.msra.mxu0 0
    %391 = vmatpush.bf16.msra.mxu0 0
    %392 = vmatpush.bf16.msra.mxu0 %v214
    %393 = vmatpush.bf16.msra.mxu0 %v198
    %394 = vmatmul.bf16.gmra.mxu0 %v254
    %v395 = vpop.f32.mrf.mxu0
    %v396 = vadd.f32 %v70, %v395
    %v397 = vpop.f32.mrf.mxu0
    %398 = vdwg.mxu0
    %399 = vmatpush.bf16.msra.mxu0 0
    %400 = vmatpush.bf16.msra.mxu0 0
    %401 = vmatpush.bf16.msra.mxu0 0
    %402 = vmatpush.bf16.msra.mxu0 0
    %403 = vmatpush.bf16.msra.mxu0 0
    %404 = vmatpush.bf16.msra.mxu0 0
    %405 = vmatpush.bf16.msra.mxu0 %v215
    %406 = vmatpush.bf16.msra.mxu0 %v199
    %407 = vmatmul.bf16.gmra.mxu0 %v254
    %v408 = vpop.f32.mrf.mxu0
    %v409 = vadd.f32 %v71, %v408
    %v410 = vpop.f32.mrf.mxu0
    %411 = vdwg.mxu0
    %412 = vmatpush.bf16.msra.mxu0 0
    %413 = vmatpush.bf16.msra.mxu0 0
    %414 = vmatpush.bf16.msra.mxu0 0
    %415 = vmatpush.bf16.msra.mxu0 0
    %416 = vmatpush.bf16.msra.mxu0 0
    %417 = vmatpush.bf16.msra.mxu0 0
    %418 = vmatpush.bf16.msra.mxu0 %v216
    %419 = vmatpush.bf16.msra.mxu0 %v200
    %420 = vmatmul.bf16.gmra.mxu0 %v254
    %v421 = vpop.f32.mrf.mxu0
    %v422 = vadd.f32 %v72, %v421
    %v423 = vpop.f32.mrf.mxu0
    %424 = vdwg.mxu0
    %425 = vmatpush.bf16.msra.mxu0 0
    %426 = vmatpush.bf16.msra.mxu0 0
    %427 = vmatpush.bf16.msra.mxu0 0
    %428 = vmatpush.bf16.msra.mxu0 0
    %429 = vmatpush.bf16.msra.mxu0 0
    %430 = vmatpush.bf16.msra.mxu0 0
    %431 = vmatpush.bf16.msra.mxu0 %v217
    %432 = vmatpush.bf16.msra.mxu0 %v201
    %433 = vmatmul.bf16.gmra.mxu0 %v254
    %v434 = vpop.f32.mrf.mxu0
    %v435 = vadd.f32 %v73, %v434
    %v436 = vpop.f32.mrf.mxu0
    %437 = vdwg.mxu0
    %438 = vmatpush.bf16.msra.mxu0 0
    %439 = vmatpush.bf16.msra.mxu0 0
    %440 = vmatpush.bf16.msra.mxu0 0
    %441 = vmatpush.bf16.msra.mxu0 0
    %442 = vmatpush.bf16.msra.mxu0 0
    %443 = vmatpush.bf16.msra.mxu0 0
    %444 = vmatpush.bf16.msra.mxu0 %v218
    %445 = vmatpush.bf16.msra.mxu0 %v202
    %446 = vmatmul.bf16.gmra.mxu0 %v254
    %v447 = vpop.f32.mrf.mxu0
    %v448 = vadd.f32 %v74, %v447
    %v449 = vpop.f32.mrf.mxu0
    %450 = vdwg.mxu0
    %451 = vmatpush.bf16.msra.mxu0 0
    %452 = vmatpush.bf16.msra.mxu0 0
    %453 = vmatpush.bf16.msra.mxu0 0
    %454 = vmatpush.bf16.msra.mxu0 0
    %455 = vmatpush.bf16.msra.mxu0 0
    %456 = vmatpush.bf16.msra.mxu0 0
    %457 = vmatpush.bf16.msra.mxu0 %v219
    %458 = vmatpush.bf16.msra.mxu0 %v203
    %459 = vmatmul.bf16.gmra.mxu0 %v254
    %v460 = vpop.f32.mrf.mxu0
    %v461 = vadd.f32 %v75, %v460
    %v462 = vpop.f32.mrf.mxu0
    %463 = vdwg.mxu0
    %v464 = vmax.f32 %v266, 0.0
    %v465 = vmax.f32 %v279, 0.0
    %v466 = vmax.f32 %v292, 0.0
    %v467 = vmax.f32 %v305, 0.0
    %v468 = vmax.f32 %v318, 0.0
    %v469 = vmax.f32 %v331, 0.0
    %v470 = vmax.f32 %v344, 0.0
    %v471 = vmax.f32 %v357, 0.0
    %v472 = vmax.f32 %v370, 0.0
    %v473 = vmax.f32 %v383, 0.0
    %v474 = vmax.f32 %v396, 0.0
    %v475 = vmax.f32 %v409, 0.0
    %v476 = vmax.f32 %v422, 0.0
    %v477 = vmax.f32 %v435, 0.0
    %v478 = vmax.f32 %v448, 0.0
    %v479 = vmax.f32 %v461, 0.0
    %v480 = vpack.c.bf16 %v464, %v464
    %v481 = vpack.c.bf16 %v465, %v465
    %v482 = vpack.c.bf16 %v466, %v466
    %v483 = vpack.c.bf16 %v467, %v467
    %v484 = vpack.c.bf16 %v468, %v468
    %v485 = vpack.c.bf16 %v469, %v469
    %v486 = vpack.c.bf16 %v470, %v470
    %v487 = vpack.c.bf16 %v471, %v471
    %v488 = vpack.c.bf16 %v472, %v472
    %v489 = vpack.c.bf16 %v473, %v473
    %v490 = vpack.c.bf16 %v474, %v474
    %v491 = vpack.c.bf16 %v475, %v475
    %v492 = vpack.c.bf16 %v476, %v476
    %v493 = vpack.c.bf16 %v477, %v477
    %v494 = vpack.c.bf16 %v478, %v478
    %v495 = vpack.c.bf16 %v479, %v479
    %v496 = vld [vmem:[%s3] sm:$0xf]
    %v497 = vld [vmem:[%s3 + $0x4] sm:$0xf]
    %v498 = vld [vmem:[%s3 + $0x8] sm:$0xf]
    %v499 = vld [vmem:[%s3 + $0xc] sm:$0xf]
    %v500 = vld [vmem:[%s3 + $0x10] sm:$0xf]
    %v501 = vld [vmem:[%s3 + $0x14] sm:$0xf]
    %v502 = vld [vmem:[%s3 + $0x18] sm:$0xf]
    %v503 = vld [vmem:[%s3 + $0x1c] sm:$0xf]
    %v504 = vld [vmem:[%s3 + $0x20] sm:$0xf]
    %v505 = vld [vmem:[%s3 + $0x24] sm:$0xf]
    %v506 = vld [vmem:[%s3 + $0x28] sm:$0xf]
    %v507 = vld [vmem:[%s3 + $0x2c] sm:$0xf]
    %v508 = vld [vmem:[%s3 + $0x30] sm:$0xf]
    %v509 = vld [vmem:[%s3 + $0x34] sm:$0xf]
    %v510 = vld [vmem:[%s3 + $0x38] sm:$0xf]
    %v511 = vld [vmem:[%s3 + $0x3c] sm:$0xf]
    %v512 = vld [vmem:[%s3 + $0x40] sm:$0xf]
    %v513 = vld [vmem:[%s3 + $0x44] sm:$0xf]
    %v514 = vld [vmem:[%s3 + $0x48] sm:$0xf]
    %v515 = vld [vmem:[%s3 + $0x4c] sm:$0xf]
    %v516 = vld [vmem:[%s3 + $0x50] sm:$0xf]
    %v517 = vld [vmem:[%s3 + $0x54] sm:$0xf]
    %v518 = vld [vmem:[%s3 + $0x58] sm:$0xf]
    %v519 = vld [vmem:[%s3 + $0x5c] sm:$0xf]
    %v520 = vld [vmem:[%s3 + $0x60] sm:$0xf]
    %v521 = vld [vmem:[%s3 + $0x64] sm:$0xf]
    %v522 = vld [vmem:[%s3 + $0x68] sm:$0xf]
    %v523 = vld [vmem:[%s3 + $0x6c] sm:$0xf]
    %v524 = vld [vmem:[%s3 + $0x70] sm:$0xf]
    %v525 = vld [vmem:[%s3 + $0x74] sm:$0xf]
    %v526 = vld [vmem:[%s3 + $0x78] sm:$0xf]
    %v527 = vld [vmem:[%s3 + $0x7c] sm:$0xf]
    %v528 = vld [vmem:[%s3 + $0x80] sm:$0xf]
    %v529 = vld [vmem:[%s3 + $0x84] sm:$0xf]
    %v530 = vld [vmem:[%s3 + $0x88] sm:$0xf]
    %v531 = vld [vmem:[%s3 + $0x8c] sm:$0xf]
    %v532 = vld [vmem:[%s3 + $0x90] sm:$0xf]
    %v533 = vld [vmem:[%s3 + $0x94] sm:$0xf]
    %v534 = vld [vmem:[%s3 + $0x98] sm:$0xf]
    %v535 = vld [vmem:[%s3 + $0x9c] sm:$0xf]
    %v536 = vld [vmem:[%s3 + $0xa0] sm:$0xf]
    %v537 = vld [vmem:[%s3 + $0xa4] sm:$0xf]
    %v538 = vld [vmem:[%s3 + $0xa8] sm:$0xf]
    %v539 = vld [vmem:[%s3 + $0xac] sm:$0xf]
    %v540 = vld [vmem:[%s3 + $0xb0] sm:$0xf]
    %v541 = vld [vmem:[%s3 + $0xb4] sm:$0xf]
    %v542 = vld [vmem:[%s3 + $0xb8] sm:$0xf]
    %v543 = vld [vmem:[%s3 + $0xbc] sm:$0xf]
    %v544 = vld [vmem:[%s3 + $0xc0] sm:$0xf]
    %v545 = vld [vmem:[%s3 + $0xc4] sm:$0xf]
    %v546 = vld [vmem:[%s3 + $0xc8] sm:$0xf]
    %v547 = vld [vmem:[%s3 + $0xcc] sm:$0xf]
    %v548 = vld [vmem:[%s3 + $0xd0] sm:$0xf]
    %v549 = vld [vmem:[%s3 + $0xd4] sm:$0xf]
    %v550 = vld [vmem:[%s3 + $0xd8] sm:$0xf]
    %v551 = vld [vmem:[%s3 + $0xdc] sm:$0xf]
    %v552 = vld [vmem:[%s3 + $0xe0] sm:$0xf]
    %v553 = vld [vmem:[%s3 + $0xe4] sm:$0xf]
    %v554 = vld [vmem:[%s3 + $0xe8] sm:$0xf]
    %v555 = vld [vmem:[%s3 + $0xec] sm:$0xf]
    %v556 = vld [vmem:[%s3 + $0xf0] sm:$0xf]
    %v557 = vld [vmem:[%s3 + $0xf4] sm:$0xf]
    %v558 = vld [vmem:[%s3 + $0xf8] sm:$0xf]
    %v559 = vld [vmem:[%s3 + $0xfc] sm:$0xf]
    %v560 = vld [vmem:[%s3 + $0x100] sm:$0xf]
    %v561 = vld [vmem:[%s3 + $0x104] sm:$0xf]
    %v562 = vld [vmem:[%s3 + $0x108] sm:$0xf]
    %v563 = vld [vmem:[%s3 + $0x10c] sm:$0xf]
    %v564 = vld [vmem:[%s3 + $0x110] sm:$0xf]
    %v565 = vld [vmem:[%s3 + $0x114] sm:$0xf]
    %v566 = vld [vmem:[%s3 + $0x118] sm:$0xf]
    %v567 = vld [vmem:[%s3 + $0x11c] sm:$0xf]
    %v568 = vld [vmem:[%s3 + $0x120] sm:$0xf]
    %v569 = vld [vmem:[%s3 + $0x124] sm:$0xf]
    %v570 = vld [vmem:[%s3 + $0x128] sm:$0xf]
    %v571 = vld [vmem:[%s3 + $0x12c] sm:$0xf]
    %v572 = vld [vmem:[%s3 + $0x130] sm:$0xf]
    %v573 = vld [vmem:[%s3 + $0x134] sm:$0xf]
    %v574 = vld [vmem:[%s3 + $0x138] sm:$0xf]
    %v575 = vld [vmem:[%s3 + $0x13c] sm:$0xf]
    %v576 = vld [vmem:[%s3 + $0x140] sm:$0xf]
    %v577 = vld [vmem:[%s3 + $0x144] sm:$0xf]
    %v578 = vld [vmem:[%s3 + $0x148] sm:$0xf]
    %v579 = vld [vmem:[%s3 + $0x14c] sm:$0xf]
    %v580 = vld [vmem:[%s3 + $0x150] sm:$0xf]
    %v581 = vld [vmem:[%s3 + $0x154] sm:$0xf]
    %v582 = vld [vmem:[%s3 + $0x158] sm:$0xf]
    %v583 = vld [vmem:[%s3 + $0x15c] sm:$0xf]
    %v584 = vld [vmem:[%s3 + $0x160] sm:$0xf]
    %v585 = vld [vmem:[%s3 + $0x164] sm:$0xf]
    %v586 = vld [vmem:[%s3 + $0x168] sm:$0xf]
    %v587 = vld [vmem:[%s3 + $0x16c] sm:$0xf]
    %v588 = vld [vmem:[%s3 + $0x170] sm:$0xf]
    %v589 = vld [vmem:[%s3 + $0x174] sm:$0xf]
    %v590 = vld [vmem:[%s3 + $0x178] sm:$0xf]
    %v591 = vld [vmem:[%s3 + $0x17c] sm:$0xf]
    %v592 = vld [vmem:[%s3 + $0x180] sm:$0xf]
    %v593 = vld [vmem:[%s3 + $0x184] sm:$0xf]
    %v594 = vld [vmem:[%s3 + $0x188] sm:$0xf]
    %v595 = vld [vmem:[%s3 + $0x18c] sm:$0xf]
    %v596 = vld [vmem:[%s3 + $0x190] sm:$0xf]
    %v597 = vld [vmem:[%s3 + $0x194] sm:$0xf]
    %v598 = vld [vmem:[%s3 + $0x198] sm:$0xf]
    %v599 = vld [vmem:[%s3 + $0x19c] sm:$0xf]
    %v600 = vld [vmem:[%s3 + $0x1a0] sm:$0xf]
    %v601 = vld [vmem:[%s3 + $0x1a4] sm:$0xf]
    %v602 = vld [vmem:[%s3 + $0x1a8] sm:$0xf]
    %v603 = vld [vmem:[%s3 + $0x1ac] sm:$0xf]
    %v604 = vld [vmem:[%s3 + $0x1b0] sm:$0xf]
    %v605 = vld [vmem:[%s3 + $0x1b4] sm:$0xf]
    %v606 = vld [vmem:[%s3 + $0x1b8] sm:$0xf]
    %v607 = vld [vmem:[%s3 + $0x1bc] sm:$0xf]
    %v608 = vld [vmem:[%s3 + $0x1c0] sm:$0xf]
    %v609 = vld [vmem:[%s3 + $0x1c4] sm:$0xf]
    %v610 = vld [vmem:[%s3 + $0x1c8] sm:$0xf]
    %v611 = vld [vmem:[%s3 + $0x1cc] sm:$0xf]
    %v612 = vld [vmem:[%s3 + $0x1d0] sm:$0xf]
    %v613 = vld [vmem:[%s3 + $0x1d4] sm:$0xf]
    %v614 = vld [vmem:[%s3 + $0x1d8] sm:$0xf]
    %v615 = vld [vmem:[%s3 + $0x1dc] sm:$0xf]
    %v616 = vld [vmem:[%s3 + $0x1e0] sm:$0xf]
    %v617 = vld [vmem:[%s3 + $0x1e4] sm:$0xf]
    %v618 = vld [vmem:[%s3 + $0x1e8] sm:$0xf]
    %v619 = vld [vmem:[%s3 + $0x1ec] sm:$0xf]
    %v620 = vld [vmem:[%s3 + $0x1f0] sm:$0xf]
    %v621 = vld [vmem:[%s3 + $0x1f4] sm:$0xf]
    %v622 = vld [vmem:[%s3 + $0x1f8] sm:$0xf]
    %v623 = vld [vmem:[%s3 + $0x1fc] sm:$0xf]
    %v624 = vld [vmem:[%s3 + $0x200] sm:$0xf]
    %v625 = vld [vmem:[%s3 + $0x204] sm:$0xf]
    %v626 = vld [vmem:[%s3 + $0x208] sm:$0xf]
    %v627 = vld [vmem:[%s3 + $0x20c] sm:$0xf]
    %v628 = vld [vmem:[%s3 + $0x210] sm:$0xf]
    %v629 = vld [vmem:[%s3 + $0x214] sm:$0xf]
    %v630 = vld [vmem:[%s3 + $0x218] sm:$0xf]
    %v631 = vld [vmem:[%s3 + $0x21c] sm:$0xf]
    %v632 = vld [vmem:[%s3 + $0x220] sm:$0xf]
    %v633 = vld [vmem:[%s3 + $0x224] sm:$0xf]
    %v634 = vld [vmem:[%s3 + $0x228] sm:$0xf]
    %v635 = vld [vmem:[%s3 + $0x22c] sm:$0xf]
    %v636 = vld [vmem:[%s3 + $0x230] sm:$0xf]
    %v637 = vld [vmem:[%s3 + $0x234] sm:$0xf]
    %v638 = vld [vmem:[%s3 + $0x238] sm:$0xf]
    %v639 = vld [vmem:[%s3 + $0x23c] sm:$0xf]
    %v640 = vld [vmem:[%s3 + $0x240] sm:$0xf]
    %v641 = vld [vmem:[%s3 + $0x244] sm:$0xf]
    %v642 = vld [vmem:[%s3 + $0x248] sm:$0xf]
    %v643 = vld [vmem:[%s3 + $0x24c] sm:$0xf]
    %v644 = vld [vmem:[%s3 + $0x250] sm:$0xf]
    %v645 = vld [vmem:[%s3 + $0x254] sm:$0xf]
    %v646 = vld [vmem:[%s3 + $0x258] sm:$0xf]
    %v647 = vld [vmem:[%s3 + $0x25c] sm:$0xf]
    %v648 = vld [vmem:[%s3 + $0x260] sm:$0xf]
    %v649 = vld [vmem:[%s3 + $0x264] sm:$0xf]
    %v650 = vld [vmem:[%s3 + $0x268] sm:$0xf]
    %v651 = vld [vmem:[%s3 + $0x26c] sm:$0xf]
    %v652 = vld [vmem:[%s3 + $0x270] sm:$0xf]
    %v653 = vld [vmem:[%s3 + $0x274] sm:$0xf]
    %v654 = vld [vmem:[%s3 + $0x278] sm:$0xf]
    %v655 = vld [vmem:[%s3 + $0x27c] sm:$0xf]
    %v656 = vld [vmem:[%s3 + $0x280] sm:$0xf]
    %v657 = vld [vmem:[%s3 + $0x284] sm:$0xf]
    %v658 = vld [vmem:[%s3 + $0x288] sm:$0xf]
    %v659 = vld [vmem:[%s3 + $0x28c] sm:$0xf]
    %v660 = vld [vmem:[%s3 + $0x290] sm:$0xf]
    %v661 = vld [vmem:[%s3 + $0x294] sm:$0xf]
    %v662 = vld [vmem:[%s3 + $0x298] sm:$0xf]
    %v663 = vld [vmem:[%s3 + $0x29c] sm:$0xf]
    %v664 = vld [vmem:[%s3 + $0x2a0] sm:$0xf]
    %v665 = vld [vmem:[%s3 + $0x2a4] sm:$0xf]
    %v666 = vld [vmem:[%s3 + $0x2a8] sm:$0xf]
    %v667 = vld [vmem:[%s3 + $0x2ac] sm:$0xf]
    %v668 = vld [vmem:[%s3 + $0x2b0] sm:$0xf]
    %v669 = vld [vmem:[%s3 + $0x2b4] sm:$0xf]
    %v670 = vld [vmem:[%s3 + $0x2b8] sm:$0xf]
    %v671 = vld [vmem:[%s3 + $0x2bc] sm:$0xf]
    %v672 = vld [vmem:[%s3 + $0x2c0] sm:$0xf]
    %v673 = vld [vmem:[%s3 + $0x2c4] sm:$0xf]
    %v674 = vld [vmem:[%s3 + $0x2c8] sm:$0xf]
    %v675 = vld [vmem:[%s3 + $0x2cc] sm:$0xf]
    %v676 = vld [vmem:[%s3 + $0x2d0] sm:$0xf]
    %v677 = vld [vmem:[%s3 + $0x2d4] sm:$0xf]
    %v678 = vld [vmem:[%s3 + $0x2d8] sm:$0xf]
    %v679 = vld [vmem:[%s3 + $0x2dc] sm:$0xf]
    %v680 = vld [vmem:[%s3 + $0x2e0] sm:$0xf]
    %v681 = vld [vmem:[%s3 + $0x2e4] sm:$0xf]
    %v682 = vld [vmem:[%s3 + $0x2e8] sm:$0xf]
    %v683 = vld [vmem:[%s3 + $0x2ec] sm:$0xf]
    %v684 = vld [vmem:[%s3 + $0x2f0] sm:$0xf]
    %v685 = vld [vmem:[%s3 + $0x2f4] sm:$0xf]
    %v686 = vld [vmem:[%s3 + $0x2f8] sm:$0xf]
    %v687 = vld [vmem:[%s3 + $0x2fc] sm:$0xf]
    %v688 = vld [vmem:[%s3 + $0x300] sm:$0xf]
    %v689 = vld [vmem:[%s3 + $0x304] sm:$0xf]
    %v690 = vld [vmem:[%s3 + $0x308] sm:$0xf]
    %v691 = vld [vmem:[%s3 + $0x30c] sm:$0xf]
    %v692 = vld [vmem:[%s3 + $0x310] sm:$0xf]
    %v693 = vld [vmem:[%s3 + $0x314] sm:$0xf]
    %v694 = vld [vmem:[%s3 + $0x318] sm:$0xf]
    %v695 = vld [vmem:[%s3 + $0x31c] sm:$0xf]
    %v696 = vld [vmem:[%s3 + $0x320] sm:$0xf]
    %v697 = vld [vmem:[%s3 + $0x324] sm:$0xf]
    %v698 = vld [vmem:[%s3 + $0x328] sm:$0xf]
    %v699 = vld [vmem:[%s3 + $0x32c] sm:$0xf]
    %v700 = vld [vmem:[%s3 + $0x330] sm:$0xf]
    %v701 = vld [vmem:[%s3 + $0x334] sm:$0xf]
    %v702 = vld [vmem:[%s3 + $0x338] sm:$0xf]
    %v703 = vld [vmem:[%s3 + $0x33c] sm:$0xf]
    %v704 = vld [vmem:[%s3 + $0x340] sm:$0xf]
    %v705 = vld [vmem:[%s3 + $0x344] sm:$0xf]
    %v706 = vld [vmem:[%s3 + $0x348] sm:$0xf]
    %v707 = vld [vmem:[%s3 + $0x34c] sm:$0xf]
    %v708 = vld [vmem:[%s3 + $0x350] sm:$0xf]
    %v709 = vld [vmem:[%s3 + $0x354] sm:$0xf]
    %v710 = vld [vmem:[%s3 + $0x358] sm:$0xf]
    %v711 = vld [vmem:[%s3 + $0x35c] sm:$0xf]
    %v712 = vld [vmem:[%s3 + $0x360] sm:$0xf]
    %v713 = vld [vmem:[%s3 + $0x364] sm:$0xf]
    %v714 = vld [vmem:[%s3 + $0x368] sm:$0xf]
    %v715 = vld [vmem:[%s3 + $0x36c] sm:$0xf]
    %v716 = vld [vmem:[%s3 + $0x370] sm:$0xf]
    %v717 = vld [vmem:[%s3 + $0x374] sm:$0xf]
    %v718 = vld [vmem:[%s3 + $0x378] sm:$0xf]
    %v719 = vld [vmem:[%s3 + $0x37c] sm:$0xf]
    %v720 = vld [vmem:[%s3 + $0x380] sm:$0xf]
    %v721 = vld [vmem:[%s3 + $0x384] sm:$0xf]
    %v722 = vld [vmem:[%s3 + $0x388] sm:$0xf]
    %v723 = vld [vmem:[%s3 + $0x38c] sm:$0xf]
    %v724 = vld [vmem:[%s3 + $0x390] sm:$0xf]
    %v725 = vld [vmem:[%s3 + $0x394] sm:$0xf]
    %v726 = vld [vmem:[%s3 + $0x398] sm:$0xf]
    %v727 = vld [vmem:[%s3 + $0x39c] sm:$0xf]
    %v728 = vld [vmem:[%s3 + $0x3a0] sm:$0xf]
    %v729 = vld [vmem:[%s3 + $0x3a4] sm:$0xf]
    %v730 = vld [vmem:[%s3 + $0x3a8] sm:$0xf]
    %v731 = vld [vmem:[%s3 + $0x3ac] sm:$0xf]
    %v732 = vld [vmem:[%s3 + $0x3b0] sm:$0xf]
    %v733 = vld [vmem:[%s3 + $0x3b4] sm:$0xf]
    %v734 = vld [vmem:[%s3 + $0x3b8] sm:$0xf]
    %v735 = vld [vmem:[%s3 + $0x3bc] sm:$0xf]
    %v736 = vld [vmem:[%s3 + $0x3c0] sm:$0xf]
    %v737 = vld [vmem:[%s3 + $0x3c4] sm:$0xf]
    %v738 = vld [vmem:[%s3 + $0x3c8] sm:$0xf]
    %v739 = vld [vmem:[%s3 + $0x3cc] sm:$0xf]
    %v740 = vld [vmem:[%s3 + $0x3d0] sm:$0xf]
    %v741 = vld [vmem:[%s3 + $0x3d4] sm:$0xf]
    %v742 = vld [vmem:[%s3 + $0x3d8] sm:$0xf]
    %v743 = vld [vmem:[%s3 + $0x3dc] sm:$0xf]
    %v744 = vld [vmem:[%s3 + $0x3e0] sm:$0xf]
    %v745 = vld [vmem:[%s3 + $0x3e4] sm:$0xf]
    %v746 = vld [vmem:[%s3 + $0x3e8] sm:$0xf]
    %v747 = vld [vmem:[%s3 + $0x3ec] sm:$0xf]
    %v748 = vld [vmem:[%s3 + $0x3f0] sm:$0xf]
    %v749 = vld [vmem:[%s3 + $0x3f4] sm:$0xf]
    %v750 = vld [vmem:[%s3 + $0x3f8] sm:$0xf]
    %v751 = vld [vmem:[%s3 + $0x3fc] sm:$0xf]
    %v752 = vld [vmem:[%s4] sm:$0x1]
    %v754 = vperm.slane %v752, 0
    %v1012 = vunpack.c.l.b16 %v496
    %v1013 = vunpack.c.l.b16 %v497
    %v1014 = vunpack.c.l.b16 %v498
    %v1015 = vunpack.c.l.b16 %v499
    %v1016 = vunpack.c.l.b16 %v500
    %v1017 = vunpack.c.l.b16 %v501
    %v1018 = vunpack.c.l.b16 %v502
    %v1019 = vunpack.c.l.b16 %v503
    %v1020 = vunpack.c.l.b16 %v504
    %v1021 = vunpack.c.l.b16 %v505
    %v1022 = vunpack.c.l.b16 %v506
    %v1023 = vunpack.c.l.b16 %v507
    %v1024 = vunpack.c.l.b16 %v508
    %v1025 = vunpack.c.l.b16 %v509
    %v1026 = vunpack.c.l.b16 %v510
    %v1027 = vunpack.c.l.b16 %v511
    %v1028 = vunpack.c.l.b16 %v512
    %v1029 = vunpack.c.l.b16 %v513
    %v1030 = vunpack.c.l.b16 %v514
    %v1031 = vunpack.c.l.b16 %v515
    %v1032 = vunpack.c.l.b16 %v516
    %v1033 = vunpack.c.l.b16 %v517
    %v1034 = vunpack.c.l.b16 %v518
    %v1035 = vunpack.c.l.b16 %v519
    %v1036 = vunpack.c.l.b16 %v520
    %v1037 = vunpack.c.l.b16 %v521
    %v1038 = vunpack.c.l.b16 %v522
    %v1039 = vunpack.c.l.b16 %v523
    %v1040 = vunpack.c.l.b16 %v524
    %v1041 = vunpack.c.l.b16 %v525
    %v1042 = vunpack.c.l.b16 %v526
    %v1043 = vunpack.c.l.b16 %v527
    %v1044 = vunpack.c.l.b16 %v528
    %v1045 = vunpack.c.l.b16 %v529
    %v1046 = vunpack.c.l.b16 %v530
    %v1047 = vunpack.c.l.b16 %v531
    %v1048 = vunpack.c.l.b16 %v532
    %v1049 = vunpack.c.l.b16 %v533
    %v1050 = vunpack.c.l.b16 %v534
    %v1051 = vunpack.c.l.b16 %v535
    %v1052 = vunpack.c.l.b16 %v536
    %v1053 = vunpack.c.l.b16 %v537
    %v1054 = vunpack.c.l.b16 %v538
    %v1055 = vunpack.c.l.b16 %v539
    %v1056 = vunpack.c.l.b16 %v540
    %v1057 = vunpack.c.l.b16 %v541
    %v1058 = vunpack.c.l.b16 %v542
    %v1059 = vunpack.c.l.b16 %v543
    %v1060 = vunpack.c.l.b16 %v544
    %v1061 = vunpack.c.l.b16 %v545
    %v1062 = vunpack.c.l.b16 %v546
    %v1063 = vunpack.c.l.b16 %v547
    %v1064 = vunpack.c.l.b16 %v548
    %v1065 = vunpack.c.l.b16 %v549
    %v1066 = vunpack.c.l.b16 %v550
    %v1067 = vunpack.c.l.b16 %v551
    %v1068 = vunpack.c.l.b16 %v552
    %v1069 = vunpack.c.l.b16 %v553
    %v1070 = vunpack.c.l.b16 %v554
    %v1071 = vunpack.c.l.b16 %v555
    %v1072 = vunpack.c.l.b16 %v556
    %v1073 = vunpack.c.l.b16 %v557
    %v1074 = vunpack.c.l.b16 %v558
    %v1075 = vunpack.c.l.b16 %v559
    %v1076 = vunpack.c.l.b16 %v560
    %v1077 = vunpack.c.l.b16 %v561
    %v1078 = vunpack.c.l.b16 %v562
    %v1079 = vunpack.c.l.b16 %v563
    %v1080 = vunpack.c.l.b16 %v564
    %v1081 = vunpack.c.l.b16 %v565
    %v1082 = vunpack.c.l.b16 %v566
    %v1083 = vunpack.c.l.b16 %v567
    %v1084 = vunpack.c.l.b16 %v568
    %v1085 = vunpack.c.l.b16 %v569
    %v1086 = vunpack.c.l.b16 %v570
    %v1087 = vunpack.c.l.b16 %v571
    %v1088 = vunpack.c.l.b16 %v572
    %v1089 = vunpack.c.l.b16 %v573
    %v1090 = vunpack.c.l.b16 %v574
    %v1091 = vunpack.c.l.b16 %v575
    %v1092 = vunpack.c.l.b16 %v576
    %v1093 = vunpack.c.l.b16 %v577
    %v1094 = vunpack.c.l.b16 %v578
    %v1095 = vunpack.c.l.b16 %v579
    %v1096 = vunpack.c.l.b16 %v580
    %v1097 = vunpack.c.l.b16 %v581
    %v1098 = vunpack.c.l.b16 %v582
    %v1099 = vunpack.c.l.b16 %v583
    %v1100 = vunpack.c.l.b16 %v584
    %v1101 = vunpack.c.l.b16 %v585
    %v1102 = vunpack.c.l.b16 %v586
    %v1103 = vunpack.c.l.b16 %v587
    %v1104 = vunpack.c.l.b16 %v588
    %v1105 = vunpack.c.l.b16 %v589
    %v1106 = vunpack.c.l.b16 %v590
    %v1107 = vunpack.c.l.b16 %v591
    %v1108 = vunpack.c.l.b16 %v592
    %v1109 = vunpack.c.l.b16 %v593
    %v1110 = vunpack.c.l.b16 %v594
    %v1111 = vunpack.c.l.b16 %v595
    %v1112 = vunpack.c.l.b16 %v596
    %v1113 = vunpack.c.l.b16 %v597
    %v1114 = vunpack.c.l.b16 %v598
    %v1115 = vunpack.c.l.b16 %v599
    %v1116 = vunpack.c.l.b16 %v600
    %v1117 = vunpack.c.l.b16 %v601
    %v1118 = vunpack.c.l.b16 %v602
    %v1119 = vunpack.c.l.b16 %v603
    %v1120 = vunpack.c.l.b16 %v604
    %v1121 = vunpack.c.l.b16 %v605
    %v1122 = vunpack.c.l.b16 %v606
    %v1123 = vunpack.c.l.b16 %v607
    %v1124 = vunpack.c.l.b16 %v608
    %v1125 = vunpack.c.l.b16 %v609
    %v1126 = vunpack.c.l.b16 %v610
    %v1127 = vunpack.c.l.b16 %v611
    %v1128 = vunpack.c.l.b16 %v612
    %v1129 = vunpack.c.l.b16 %v613
    %v1130 = vunpack.c.l.b16 %v614
    %v1131 = vunpack.c.l.b16 %v615
    %v1132 = vunpack.c.l.b16 %v616
    %v1133 = vunpack.c.l.b16 %v617
    %v1134 = vunpack.c.l.b16 %v618
    %v1135 = vunpack.c.l.b16 %v619
    %v1136 = vunpack.c.l.b16 %v620
    %v1137 = vunpack.c.l.b16 %v621
    %v1138 = vunpack.c.l.b16 %v622
    %v1139 = vunpack.c.l.b16 %v623
    %v1140 = vunpack.c.l.b16 %v624
    %v1141 = vunpack.c.l.b16 %v625
    %v1142 = vunpack.c.l.b16 %v626
    %v1143 = vunpack.c.l.b16 %v627
    %v1144 = vunpack.c.l.b16 %v628
    %v1145 = vunpack.c.l.b16 %v629
    %v1146 = vunpack.c.l.b16 %v630
    %v1147 = vunpack.c.l.b16 %v631
    %v1148 = vunpack.c.l.b16 %v632
    %v1149 = vunpack.c.l.b16 %v633
    %v1150 = vunpack.c.l.b16 %v634
    %v1151 = vunpack.c.l.b16 %v635
    %v1152 = vunpack.c.l.b16 %v636
    %v1153 = vunpack.c.l.b16 %v637
    %v1154 = vunpack.c.l.b16 %v638
    %v1155 = vunpack.c.l.b16 %v639
    %v1156 = vunpack.c.l.b16 %v640
    %v1157 = vunpack.c.l.b16 %v641
    %v1158 = vunpack.c.l.b16 %v642
    %v1159 = vunpack.c.l.b16 %v643
    %v1160 = vunpack.c.l.b16 %v644
    %v1161 = vunpack.c.l.b16 %v645
    %v1162 = vunpack.c.l.b16 %v646
    %v1163 = vunpack.c.l.b16 %v647
    %v1164 = vunpack.c.l.b16 %v648
    %v1165 = vunpack.c.l.b16 %v649
    %v1166 = vunpack.c.l.b16 %v650
    %v1167 = vunpack.c.l.b16 %v651
    %v1168 = vunpack.c.l.b16 %v652
    %v1169 = vunpack.c.l.b16 %v653
    %v1170 = vunpack.c.l.b16 %v654
    %v1171 = vunpack.c.l.b16 %v655
    %v1172 = vunpack.c.l.b16 %v656
    %v1173 = vunpack.c.l.b16 %v657
    %v1174 = vunpack.c.l.b16 %v658
    %v1175 = vunpack.c.l.b16 %v659
    %v1176 = vunpack.c.l.b16 %v660
    %v1177 = vunpack.c.l.b16 %v661
    %v1178 = vunpack.c.l.b16 %v662
    %v1179 = vunpack.c.l.b16 %v663
    %v1180 = vunpack.c.l.b16 %v664
    %v1181 = vunpack.c.l.b16 %v665
    %v1182 = vunpack.c.l.b16 %v666
    %v1183 = vunpack.c.l.b16 %v667
    %v1184 = vunpack.c.l.b16 %v668
    %v1185 = vunpack.c.l.b16 %v669
    %v1186 = vunpack.c.l.b16 %v670
    %v1187 = vunpack.c.l.b16 %v671
    %v1188 = vunpack.c.l.b16 %v672
    %v1189 = vunpack.c.l.b16 %v673
    %v1190 = vunpack.c.l.b16 %v674
    %v1191 = vunpack.c.l.b16 %v675
    %v1192 = vunpack.c.l.b16 %v676
    %v1193 = vunpack.c.l.b16 %v677
    %v1194 = vunpack.c.l.b16 %v678
    %v1195 = vunpack.c.l.b16 %v679
    %v1196 = vunpack.c.l.b16 %v680
    %v1197 = vunpack.c.l.b16 %v681
    %v1198 = vunpack.c.l.b16 %v682
    %v1199 = vunpack.c.l.b16 %v683
    %v1200 = vunpack.c.l.b16 %v684
    %v1201 = vunpack.c.l.b16 %v685
    %v1202 = vunpack.c.l.b16 %v686
    %v1203 = vunpack.c.l.b16 %v687
    %v1204 = vunpack.c.l.b16 %v688
    %v1205 = vunpack.c.l.b16 %v689
    %v1206 = vunpack.c.l.b16 %v690
    %v1207 = vunpack.c.l.b16 %v691
    %v1208 = vunpack.c.l.b16 %v692
    %v1209 = vunpack.c.l.b16 %v693
    %v1210 = vunpack.c.l.b16 %v694
    %v1211 = vunpack.c.l.b16 %v695
    %v1212 = vunpack.c.l.b16 %v696
    %v1213 = vunpack.c.l.b16 %v697
    %v1214 = vunpack.c.l.b16 %v698
    %v1215 = vunpack.c.l.b16 %v699
    %v1216 = vunpack.c.l.b16 %v700
    %v1217 = vunpack.c.l.b16 %v701
    %v1218 = vunpack.c.l.b16 %v702
    %v1219 = vunpack.c.l.b16 %v703
    %v1220 = vunpack.c.l.b16 %v704
    %v1221 = vunpack.c.l.b16 %v705
    %v1222 = vunpack.c.l.b16 %v706
    %v1223 = vunpack.c.l.b16 %v707
    %v1224 = vunpack.c.l.b16 %v708
    %v1225 = vunpack.c.l.b16 %v709
    %v1226 = vunpack.c.l.b16 %v710
    %v1227 = vunpack.c.l.b16 %v711
    %v1228 = vunpack.c.l.b16 %v712
    %v1229 = vunpack.c.l.b16 %v713
    %v1230 = vunpack.c.l.b16 %v714
    %v1231 = vunpack.c.l.b16 %v715
    %v1232 = vunpack.c.l.b16 %v716
    %v1233 = vunpack.c.l.b16 %v717
    %v1234 = vunpack.c.l.b16 %v718
    %v1235 = vunpack.c.l.b16 %v719
    %v1236 = vunpack.c.l.b16 %v720
    %v1237 = vunpack.c.l.b16 %v721
    %v1238 = vunpack.c.l.b16 %v722
    %v1239 = vunpack.c.l.b16 %v723
    %v1240 = vunpack.c.l.b16 %v724
    %v1241 = vunpack.c.l.b16 %v725
    %v1242 = vunpack.c.l.b16 %v726
    %v1243 = vunpack.c.l.b16 %v727
    %v1244 = vunpack.c.l.b16 %v728
    %v1245 = vunpack.c.l.b16 %v729
    %v1246 = vunpack.c.l.b16 %v730
    %v1247 = vunpack.c.l.b16 %v731
    %v1248 = vunpack.c.l.b16 %v732
    %v1249 = vunpack.c.l.b16 %v733
    %v1250 = vunpack.c.l.b16 %v734
    %v1251 = vunpack.c.l.b16 %v735
    %v1252 = vunpack.c.l.b16 %v736
    %v1253 = vunpack.c.l.b16 %v737
    %v1254 = vunpack.c.l.b16 %v738
    %v1255 = vunpack.c.l.b16 %v739
    %v1256 = vunpack.c.l.b16 %v740
    %v1257 = vunpack.c.l.b16 %v741
    %v1258 = vunpack.c.l.b16 %v742
    %v1259 = vunpack.c.l.b16 %v743
    %v1260 = vunpack.c.l.b16 %v744
    %v1261 = vunpack.c.l.b16 %v745
    %v1262 = vunpack.c.l.b16 %v746
    %v1263 = vunpack.c.l.b16 %v747
    %v1264 = vunpack.c.l.b16 %v748
    %v1265 = vunpack.c.l.b16 %v749
    %v1266 = vunpack.c.l.b16 %v750
    %v1267 = vunpack.c.l.b16 %v751
    %v1268 = vpack.c.b16 %v1013, %v1012
    %v1269 = vpack.c.b16 %v1015, %v1014
    %v1270 = vpack.c.b16 %v1017, %v1016
    %v1271 = vpack.c.b16 %v1019, %v1018
    %v1272 = vpack.c.b16 %v1021, %v1020
    %v1273 = vpack.c.b16 %v1023, %v1022
    %v1274 = vpack.c.b16 %v1025, %v1024
    %v1275 = vpack.c.b16 %v1027, %v1026
    %v1276 = vpack.c.b16 %v1029, %v1028
    %v1277 = vpack.c.b16 %v1031, %v1030
    %v1278 = vpack.c.b16 %v1033, %v1032
    %v1279 = vpack.c.b16 %v1035, %v1034
    %v1280 = vpack.c.b16 %v1037, %v1036
    %v1281 = vpack.c.b16 %v1039, %v1038
    %v1282 = vpack.c.b16 %v1041, %v1040
    %v1283 = vpack.c.b16 %v1043, %v1042
    %v1284 = vpack.c.b16 %v1045, %v1044
    %v1285 = vpack.c.b16 %v1047, %v1046
    %v1286 = vpack.c.b16 %v1049, %v1048
    %v1287 = vpack.c.b16 %v1051, %v1050
    %v1288 = vpack.c.b16 %v1053, %v1052
    %v1289 = vpack.c.b16 %v1055, %v1054
    %v1290 = vpack.c.b16 %v1057, %v1056
    %v1291 = vpack.c.b16 %v1059, %v1058
    %v1292 = vpack.c.b16 %v1061, %v1060
    %v1293 = vpack.c.b16 %v1063, %v1062
    %v1294 = vpack.c.b16 %v1065, %v1064
    %v1295 = vpack.c.b16 %v1067, %v1066
    %v1296 = vpack.c.b16 %v1069, %v1068
    %v1297 = vpack.c.b16 %v1071, %v1070
    %v1298 = vpack.c.b16 %v1073, %v1072
    %v1299 = vpack.c.b16 %v1075, %v1074
    %v1300 = vpack.c.b16 %v1077, %v1076
    %v1301 = vpack.c.b16 %v1079, %v1078
    %v1302 = vpack.c.b16 %v1081, %v1080
    %v1303 = vpack.c.b16 %v1083, %v1082
    %v1304 = vpack.c.b16 %v1085, %v1084
    %v1305 = vpack.c.b16 %v1087, %v1086
    %v1306 = vpack.c.b16 %v1089, %v1088
    %v1307 = vpack.c.b16 %v1091, %v1090
    %v1308 = vpack.c.b16 %v1093, %v1092
    %v1309 = vpack.c.b16 %v1095, %v1094
    %v1310 = vpack.c.b16 %v1097, %v1096
    %v1311 = vpack.c.b16 %v1099, %v1098
    %v1312 = vpack.c.b16 %v1101, %v1100
    %v1313 = vpack.c.b16 %v1103, %v1102
    %v1314 = vpack.c.b16 %v1105, %v1104
    %v1315 = vpack.c.b16 %v1107, %v1106
    %v1316 = vpack.c.b16 %v1109, %v1108
    %v1317 = vpack.c.b16 %v1111, %v1110
    %v1318 = vpack.c.b16 %v1113, %v1112
    %v1319 = vpack.c.b16 %v1115, %v1114
    %v1320 = vpack.c.b16 %v1117, %v1116
    %v1321 = vpack.c.b16 %v1119, %v1118
    %v1322 = vpack.c.b16 %v1121, %v1120
    %v1323 = vpack.c.b16 %v1123, %v1122
    %v1324 = vpack.c.b16 %v1125, %v1124
    %v1325 = vpack.c.b16 %v1127, %v1126
    %v1326 = vpack.c.b16 %v1129, %v1128
    %v1327 = vpack.c.b16 %v1131, %v1130
    %v1328 = vpack.c.b16 %v1133, %v1132
    %v1329 = vpack.c.b16 %v1135, %v1134
    %v1330 = vpack.c.b16 %v1137, %v1136
    %v1331 = vpack.c.b16 %v1139, %v1138
    %v1332 = vpack.c.b16 %v1141, %v1140
    %v1333 = vpack.c.b16 %v1143, %v1142
    %v1334 = vpack.c.b16 %v1145, %v1144
    %v1335 = vpack.c.b16 %v1147, %v1146
    %v1336 = vpack.c.b16 %v1149, %v1148
    %v1337 = vpack.c.b16 %v1151, %v1150
    %v1338 = vpack.c.b16 %v1153, %v1152
    %v1339 = vpack.c.b16 %v1155, %v1154
    %v1340 = vpack.c.b16 %v1157, %v1156
    %v1341 = vpack.c.b16 %v1159, %v1158
    %v1342 = vpack.c.b16 %v1161, %v1160
    %v1343 = vpack.c.b16 %v1163, %v1162
    %v1344 = vpack.c.b16 %v1165, %v1164
    %v1345 = vpack.c.b16 %v1167, %v1166
    %v1346 = vpack.c.b16 %v1169, %v1168
    %v1347 = vpack.c.b16 %v1171, %v1170
    %v1348 = vpack.c.b16 %v1173, %v1172
    %v1349 = vpack.c.b16 %v1175, %v1174
    %v1350 = vpack.c.b16 %v1177, %v1176
    %v1351 = vpack.c.b16 %v1179, %v1178
    %v1352 = vpack.c.b16 %v1181, %v1180
    %v1353 = vpack.c.b16 %v1183, %v1182
    %v1354 = vpack.c.b16 %v1185, %v1184
    %v1355 = vpack.c.b16 %v1187, %v1186
    %v1356 = vpack.c.b16 %v1189, %v1188
    %v1357 = vpack.c.b16 %v1191, %v1190
    %v1358 = vpack.c.b16 %v1193, %v1192
    %v1359 = vpack.c.b16 %v1195, %v1194
    %v1360 = vpack.c.b16 %v1197, %v1196
    %v1361 = vpack.c.b16 %v1199, %v1198
    %v1362 = vpack.c.b16 %v1201, %v1200
    %v1363 = vpack.c.b16 %v1203, %v1202
    %v1364 = vpack.c.b16 %v1205, %v1204
    %v1365 = vpack.c.b16 %v1207, %v1206
    %v1366 = vpack.c.b16 %v1209, %v1208
    %v1367 = vpack.c.b16 %v1211, %v1210
    %v1368 = vpack.c.b16 %v1213, %v1212
    %v1369 = vpack.c.b16 %v1215, %v1214
    %v1370 = vpack.c.b16 %v1217, %v1216
    %v1371 = vpack.c.b16 %v1219, %v1218
    %v1372 = vpack.c.b16 %v1221, %v1220
    %v1373 = vpack.c.b16 %v1223, %v1222
    %v1374 = vpack.c.b16 %v1225, %v1224
    %v1375 = vpack.c.b16 %v1227, %v1226
    %v1376 = vpack.c.b16 %v1229, %v1228
    %v1377 = vpack.c.b16 %v1231, %v1230
    %v1378 = vpack.c.b16 %v1233, %v1232
    %v1379 = vpack.c.b16 %v1235, %v1234
    %v1380 = vpack.c.b16 %v1237, %v1236
    %v1381 = vpack.c.b16 %v1239, %v1238
    %v1382 = vpack.c.b16 %v1241, %v1240
    %v1383 = vpack.c.b16 %v1243, %v1242
    %v1384 = vpack.c.b16 %v1245, %v1244
    %v1385 = vpack.c.b16 %v1247, %v1246
    %v1386 = vpack.c.b16 %v1249, %v1248
    %v1387 = vpack.c.b16 %v1251, %v1250
    %v1388 = vpack.c.b16 %v1253, %v1252
    %v1389 = vpack.c.b16 %v1255, %v1254
    %v1390 = vpack.c.b16 %v1257, %v1256
    %v1391 = vpack.c.b16 %v1259, %v1258
    %v1392 = vpack.c.b16 %v1261, %v1260
    %v1393 = vpack.c.b16 %v1263, %v1262
    %v1394 = vpack.c.b16 %v1265, %v1264
    %v1395 = vpack.c.b16 %v1267, %v1266
    %1524 = vmatpush.bf16.msra.mxu0 %v1275
    %1525 = vmatpush.bf16.msra.mxu0 %v1274
    %1526 = vmatpush.bf16.msra.mxu0 %v1273
    %1527 = vmatpush.bf16.msra.mxu0 %v1272
    %1528 = vmatpush.bf16.msra.mxu0 %v1271
    %1529 = vmatpush.bf16.msra.mxu0 %v1270
    %1530 = vmatpush.bf16.msra.mxu0 %v1269
    %1531 = vmatpush.bf16.msra.mxu0 %v1268
    %1532 = vmatmul.bf16.gmra.mxu0 %v480
    %v1533 = vpop.f32.mrf.mxu0
    %v1534 = vadd.f32 %v754, %v1533
    %v1535 = vpop.f32.mrf.mxu0
    %1536 = vdwg.mxu0
    %1537 = vmatpush.bf16.msra.mxu0 %v1283
    %1538 = vmatpush.bf16.msra.mxu0 %v1282
    %1539 = vmatpush.bf16.msra.mxu0 %v1281
    %1540 = vmatpush.bf16.msra.mxu0 %v1280
    %1541 = vmatpush.bf16.msra.mxu0 %v1279
    %1542 = vmatpush.bf16.msra.mxu0 %v1278
    %1543 = vmatpush.bf16.msra.mxu0 %v1277
    %1544 = vmatpush.bf16.msra.mxu0 %v1276
    %1545 = vmatmul.bf16.gmra.mxu0 %v481
    %v1546 = vpop.f32.mrf.mxu0
    %v1547 = vadd.f32 %v1534, %v1546
    %v1548 = vpop.f32.mrf.mxu0
    %1549 = vdwg.mxu0
    %1550 = vmatpush.bf16.msra.mxu0 %v1291
    %1551 = vmatpush.bf16.msra.mxu0 %v1290
    %1552 = vmatpush.bf16.msra.mxu0 %v1289
    %1553 = vmatpush.bf16.msra.mxu0 %v1288
    %1554 = vmatpush.bf16.msra.mxu0 %v1287
    %1555 = vmatpush.bf16.msra.mxu0 %v1286
    %1556 = vmatpush.bf16.msra.mxu0 %v1285
    %1557 = vmatpush.bf16.msra.mxu0 %v1284
    %1558 = vmatmul.bf16.gmra.mxu0 %v482
    %v1559 = vpop.f32.mrf.mxu0
    %v1560 = vadd.f32 %v1547, %v1559
    %v1561 = vpop.f32.mrf.mxu0
    %1562 = vdwg.mxu0
    %1563 = vmatpush.bf16.msra.mxu0 %v1299
    %1564 = vmatpush.bf16.msra.mxu0 %v1298
    %1565 = vmatpush.bf16.msra.mxu0 %v1297
    %1566 = vmatpush.bf16.msra.mxu0 %v1296
    %1567 = vmatpush.bf16.msra.mxu0 %v1295
    %1568 = vmatpush.bf16.msra.mxu0 %v1294
    %1569 = vmatpush.bf16.msra.mxu0 %v1293
    %1570 = vmatpush.bf16.msra.mxu0 %v1292
    %1571 = vmatmul.bf16.gmra.mxu0 %v483
    %v1572 = vpop.f32.mrf.mxu0
    %v1573 = vadd.f32 %v1560, %v1572
    %v1574 = vpop.f32.mrf.mxu0
    %1575 = vdwg.mxu0
    %1576 = vmatpush.bf16.msra.mxu0 %v1307
    %1577 = vmatpush.bf16.msra.mxu0 %v1306
    %1578 = vmatpush.bf16.msra.mxu0 %v1305
    %1579 = vmatpush.bf16.msra.mxu0 %v1304
    %1580 = vmatpush.bf16.msra.mxu0 %v1303
    %1581 = vmatpush.bf16.msra.mxu0 %v1302
    %1582 = vmatpush.bf16.msra.mxu0 %v1301
    %1583 = vmatpush.bf16.msra.mxu0 %v1300
    %1584 = vmatmul.bf16.gmra.mxu0 %v484
    %v1585 = vpop.f32.mrf.mxu0
    %v1586 = vadd.f32 %v1573, %v1585
    %v1587 = vpop.f32.mrf.mxu0
    %1588 = vdwg.mxu0
    %1589 = vmatpush.bf16.msra.mxu0 %v1315
    %1590 = vmatpush.bf16.msra.mxu0 %v1314
    %1591 = vmatpush.bf16.msra.mxu0 %v1313
    %1592 = vmatpush.bf16.msra.mxu0 %v1312
    %1593 = vmatpush.bf16.msra.mxu0 %v1311
    %1594 = vmatpush.bf16.msra.mxu0 %v1310
    %1595 = vmatpush.bf16.msra.mxu0 %v1309
    %1596 = vmatpush.bf16.msra.mxu0 %v1308
    %1597 = vmatmul.bf16.gmra.mxu0 %v485
    %v1598 = vpop.f32.mrf.mxu0
    %v1599 = vadd.f32 %v1586, %v1598
    %v1600 = vpop.f32.mrf.mxu0
    %1601 = vdwg.mxu0
    %1602 = vmatpush.bf16.msra.mxu0 %v1323
    %1603 = vmatpush.bf16.msra.mxu0 %v1322
    %1604 = vmatpush.bf16.msra.mxu0 %v1321
    %1605 = vmatpush.bf16.msra.mxu0 %v1320
    %1606 = vmatpush.bf16.msra.mxu0 %v1319
    %1607 = vmatpush.bf16.msra.mxu0 %v1318
    %1608 = vmatpush.bf16.msra.mxu0 %v1317
    %1609 = vmatpush.bf16.msra.mxu0 %v1316
    %1610 = vmatmul.bf16.gmra.mxu0 %v486
    %v1611 = vpop.f32.mrf.mxu0
    %v1612 = vadd.f32 %v1599, %v1611
    %v1613 = vpop.f32.mrf.mxu0
    %1614 = vdwg.mxu0
    %1615 = vmatpush.bf16.msra.mxu0 %v1331
    %1616 = vmatpush.bf16.msra.mxu0 %v1330
    %1617 = vmatpush.bf16.msra.mxu0 %v1329
    %1618 = vmatpush.bf16.msra.mxu0 %v1328
    %1619 = vmatpush.bf16.msra.mxu0 %v1327
    %1620 = vmatpush.bf16.msra.mxu0 %v1326
    %1621 = vmatpush.bf16.msra.mxu0 %v1325
    %1622 = vmatpush.bf16.msra.mxu0 %v1324
    %1623 = vmatmul.bf16.gmra.mxu0 %v487
    %v1624 = vpop.f32.mrf.mxu0
    %v1625 = vadd.f32 %v1612, %v1624
    %v1626 = vpop.f32.mrf.mxu0
    %1627 = vdwg.mxu0
    %1628 = vmatpush.bf16.msra.mxu0 %v1339
    %1629 = vmatpush.bf16.msra.mxu0 %v1338
    %1630 = vmatpush.bf16.msra.mxu0 %v1337
    %1631 = vmatpush.bf16.msra.mxu0 %v1336
    %1632 = vmatpush.bf16.msra.mxu0 %v1335
    %1633 = vmatpush.bf16.msra.mxu0 %v1334
    %1634 = vmatpush.bf16.msra.mxu0 %v1333
    %1635 = vmatpush.bf16.msra.mxu0 %v1332
    %1636 = vmatmul.bf16.gmra.mxu0 %v488
    %v1637 = vpop.f32.mrf.mxu0
    %v1638 = vadd.f32 %v1625, %v1637
    %v1639 = vpop.f32.mrf.mxu0
    %1640 = vdwg.mxu0
    %1641 = vmatpush.bf16.msra.mxu0 %v1347
    %1642 = vmatpush.bf16.msra.mxu0 %v1346
    %1643 = vmatpush.bf16.msra.mxu0 %v1345
    %1644 = vmatpush.bf16.msra.mxu0 %v1344
    %1645 = vmatpush.bf16.msra.mxu0 %v1343
    %1646 = vmatpush.bf16.msra.mxu0 %v1342
    %1647 = vmatpush.bf16.msra.mxu0 %v1341
    %1648 = vmatpush.bf16.msra.mxu0 %v1340
    %1649 = vmatmul.bf16.gmra.mxu0 %v489
    %v1650 = vpop.f32.mrf.mxu0
    %v1651 = vadd.f32 %v1638, %v1650
    %v1652 = vpop.f32.mrf.mxu0
    %1653 = vdwg.mxu0
    %1654 = vmatpush.bf16.msra.mxu0 %v1355
    %1655 = vmatpush.bf16.msra.mxu0 %v1354
    %1656 = vmatpush.bf16.msra.mxu0 %v1353
    %1657 = vmatpush.bf16.msra.mxu0 %v1352
    %1658 = vmatpush.bf16.msra.mxu0 %v1351
    %1659 = vmatpush.bf16.msra.mxu0 %v1350
    %1660 = vmatpush.bf16.msra.mxu0 %v1349
    %1661 = vmatpush.bf16.msra.mxu0 %v1348
    %1662 = vmatmul.bf16.gmra.mxu0 %v490
    %v1663 = vpop.f32.mrf.mxu0
    %v1664 = vadd.f32 %v1651, %v1663
    %v1665 = vpop.f32.mrf.mxu0
    %1666 = vdwg.mxu0
    %1667 = vmatpush.bf16.msra.mxu0 %v1363
    %1668 = vmatpush.bf16.msra.mxu0 %v1362
    %1669 = vmatpush.bf16.msra.mxu0 %v1361
    %1670 = vmatpush.bf16.msra.mxu0 %v1360
    %1671 = vmatpush.bf16.msra.mxu0 %v1359
    %1672 = vmatpush.bf16.msra.mxu0 %v1358
    %1673 = vmatpush.bf16.msra.mxu0 %v1357
    %1674 = vmatpush.bf16.msra.mxu0 %v1356
    %1675 = vmatmul.bf16.gmra.mxu0 %v491
    %v1676 = vpop.f32.mrf.mxu0
    %v1677 = vadd.f32 %v1664, %v1676
    %v1678 = vpop.f32.mrf.mxu0
    %1679 = vdwg.mxu0
    %1680 = vmatpush.bf16.msra.mxu0 %v1371
    %1681 = vmatpush.bf16.msra.mxu0 %v1370
    %1682 = vmatpush.bf16.msra.mxu0 %v1369
    %1683 = vmatpush.bf16.msra.mxu0 %v1368
    %1684 = vmatpush.bf16.msra.mxu0 %v1367
    %1685 = vmatpush.bf16.msra.mxu0 %v1366
    %1686 = vmatpush.bf16.msra.mxu0 %v1365
    %1687 = vmatpush.bf16.msra.mxu0 %v1364
    %1688 = vmatmul.bf16.gmra.mxu0 %v492
    %v1689 = vpop.f32.mrf.mxu0
    %v1690 = vadd.f32 %v1677, %v1689
    %v1691 = vpop.f32.mrf.mxu0
    %1692 = vdwg.mxu0
    %1693 = vmatpush.bf16.msra.mxu0 %v1379
    %1694 = vmatpush.bf16.msra.mxu0 %v1378
    %1695 = vmatpush.bf16.msra.mxu0 %v1377
    %1696 = vmatpush.bf16.msra.mxu0 %v1376
    %1697 = vmatpush.bf16.msra.mxu0 %v1375
    %1698 = vmatpush.bf16.msra.mxu0 %v1374
    %1699 = vmatpush.bf16.msra.mxu0 %v1373
    %1700 = vmatpush.bf16.msra.mxu0 %v1372
    %1701 = vmatmul.bf16.gmra.mxu0 %v493
    %v1702 = vpop.f32.mrf.mxu0
    %v1703 = vadd.f32 %v1690, %v1702
    %v1704 = vpop.f32.mrf.mxu0
    %1705 = vdwg.mxu0
    %1706 = vmatpush.bf16.msra.mxu0 %v1387
    %1707 = vmatpush.bf16.msra.mxu0 %v1386
    %1708 = vmatpush.bf16.msra.mxu0 %v1385
    %1709 = vmatpush.bf16.msra.mxu0 %v1384
    %1710 = vmatpush.bf16.msra.mxu0 %v1383
    %1711 = vmatpush.bf16.msra.mxu0 %v1382
    %1712 = vmatpush.bf16.msra.mxu0 %v1381
    %1713 = vmatpush.bf16.msra.mxu0 %v1380
    %1714 = vmatmul.bf16.gmra.mxu0 %v494
    %v1715 = vpop.f32.mrf.mxu0
    %v1716 = vadd.f32 %v1703, %v1715
    %v1717 = vpop.f32.mrf.mxu0
    %1718 = vdwg.mxu0
    %1719 = vmatpush.bf16.msra.mxu0 %v1395
    %1720 = vmatpush.bf16.msra.mxu0 %v1394
    %1721 = vmatpush.bf16.msra.mxu0 %v1393
    %1722 = vmatpush.bf16.msra.mxu0 %v1392
    %1723 = vmatpush.bf16.msra.mxu0 %v1391
    %1724 = vmatpush.bf16.msra.mxu0 %v1390
    %1725 = vmatpush.bf16.msra.mxu0 %v1389
    %1726 = vmatpush.bf16.msra.mxu0 %v1388
    %1727 = vmatmul.bf16.gmra.mxu0 %v495
    %v1728 = vpop.f32.mrf.mxu0
    %v1729 = vadd.f32 %v1716, %v1728
    %v1730 = vpop.f32.mrf.mxu0
    %1731 = vdwg.mxu0
    %vm1732 = vcmask 130048
    %1733 = vst.msk [vmem:[#allocation2] sm:$0xff] %vm1732, %v1729
    // Predicated region
    $region22: #{mlp_forward.1} parent=1 // pred_check
      _
    $region23: #{mlp_forward.1} parent=1 // pred_check_branch
      %1735 = sbr.rel (0) target = $region25
    $region24: #{mlp_forward.1} parent=1 // pred_region
      %1737 = vsyncadd [#allocation3], 0
      %s1739 = sshll.u32 [#allocation2], 4
      %s1740 = int_to_ptr.vmem [resolvable:$true] %s1739
      %s1741 = sshll.u32 %s5, 4
      %s1742 = int_to_ptr.hbm [resolvable:$true] %s1741
      %1744 = dma.vmem_to_hbm [thread:$0]  %s1740, 128, %s1742, [#allocation3]
    $region25: #{mlp_forward.1} parent=1 // pred_fallthru
      _
    // Predicated region
    $region26: #{mlp_forward.1} parent=1 // pred_check
      _
    $region27: #{mlp_forward.1} parent=1 // pred_check_branch
      %1746 = sbr.rel (0) target = $region29
    $region28: #{mlp_forward.1} parent=1 // pred_region
      %1748 = dma.done [#allocation3], 128
    $region29: #{mlp_forward.1} parent=1 // pred_fallthru
      _
    %1749 = vsyncpa [#allocation3], 1

</llo_original>
